<compile_context>
chip_gen: v5e
topology: v5e:2x2
jax: 0.10.0
libtpu: 0.0.40
codegen_flags: <defaults>
</compile_context>

<pallas_src>
import functools

import jax
import jax.numpy as jnp
from jax import lax
from jax.experimental import pallas as pl
from jax.experimental.pallas import tpu as pltpu


# ----------------------------- fused Pallas kernel ---------------------------


def _fused_attention_kernel(x_ref, wproj_ref, wout_ref, bout_ref, bias_ref,
                            o_ref, *, heads, dim_qk, dim_v):
    # x_ref:    (n, dim)                    one batch element
    # wproj_ref:(dim, 2*h*dqk + dim)        [Wq^T*scale | Wk^T | Wv^T] fused
    # wout_ref: (dim, dim)                  pre-transposed to_out weight
    # bout_ref: (1, dim)                    to_out bias
    # bias_ref: (h, n, n)                   relative-position bias per head
    x = x_ref[...].astype(jnp.float32)

    # Single fused projection (to_qk / to_v are bias-free nn.Linear).
    proj = jnp.dot(x, wproj_ref[...], preferred_element_type=jnp.float32)

    h_dqk = heads * dim_qk
    v_off = 2 * h_dqk
    outs = []
    for hd in range(heads):  # static unroll over heads (heads is small)
        # Scale is already folded into the q columns of wproj.
        q_h = proj[:, hd * dim_qk:(hd + 1) * dim_qk]                        # (n, dqk)
        k_h = proj[:, h_dqk + hd * dim_qk: h_dqk + (hd + 1) * dim_qk]       # (n, dqk)
        v_h = proj[:, v_off + hd * dim_v: v_off + (hd + 1) * dim_v]         # (n, dv)

        # q @ k^T without an explicit transpose: contract last dims of both.
        dots = lax.dot_general(q_h, k_h, (((1,), (1,)), ((), ())),
                               preferred_element_type=jnp.float32)          # (n, n)
        dots = dots + bias_ref[hd]                                          # rel-pos bias
        dots = dots - jnp.max(dots, axis=-1, keepdims=True)
        p = jnp.exp(dots)
        # approx=True would move this to the EUP slot; kept exact so the
        # 1e-4 check against the pure-JAX reference is robust.
        inv = pl.reciprocal(jnp.sum(p, axis=-1, keepdims=True), approx=False)
        attn = p * inv
        outs.append(jnp.dot(attn, v_h, preferred_element_type=jnp.float32))

    # Heads concatenated along lanes -> (n, heads*dv) == 'b n (h d)' layout,
    # consumed directly by the output projection (lane-dense store).
    merged = jnp.concatenate(outs, axis=-1)                                 # (n, dim)
    out = jnp.dot(merged, wout_ref[...], preferred_element_type=jnp.float32)
    out = out + bout_ref[...]
    o_ref[...] = out.astype(o_ref.dtype)


# ----------------------------- forward wrapper --------------------------------


def prepare_params(params, *, heads, dim_qk):
    """One-time layout prep.

    * Transpose nn.Linear (out, in) weights to (in, out).
    * Fold the softmax scale into the q columns of the qk projection.
    * Fuse [Wq^T*scale | Wk^T | Wv^T] into a single projection matrix so the
      kernel issues one MXU matmul for all three projections.
    """
    scale = dim_qk ** (-0.5)
    h_dqk = heads * dim_qk
    w_qk_t = jnp.transpose(params["w_qk"]).astype(jnp.float32)    # (dim, 2*h*dqk)
    w_qk_t = w_qk_t.at[:, :h_dqk].multiply(scale)                 # fold scale into q
    w_v_t = jnp.transpose(params["w_v"]).astype(jnp.float32)      # (dim, dim)
    return {
        "w_proj_t": jnp.concatenate([w_qk_t, w_v_t], axis=-1),    # (dim, 2*h*dqk+dim)
        "w_out_t": jnp.transpose(params["w_out"]).astype(jnp.float32),
        "b_out_2d": params["b_out"].reshape(1, -1).astype(jnp.float32),
        "conv": params["conv"],
    }


def attention_forward(x, prepared, *, heads, dim_qk, max_pos_emb):
    b, n, dim = x.shape
    dv = dim // heads

    # Tiny relative-position bias table lookup (h, n, n); plain-JAX glue.
    # TODO(synk): for production sequence lengths switch the kernel to a
    # flash-style KV-tiled online softmax and generate this bias in-kernel
    # from the (h, 2*max_pos_emb+1) table instead of materializing O(h*n^2).
    seq = jnp.arange(n)
    dist = jnp.clip(seq[None, :] - seq[:, None], -max_pos_emb, max_pos_emb) + max_pos_emb
    rel_bias = prepared["conv"][:, dist].astype(jnp.float32)               # (h, n, n)

    kernel = functools.partial(_fused_attention_kernel, heads=heads,
                               dim_qk=dim_qk, dim_v=dv)
    proj_cols = 2 * heads * dim_qk + dim

    return pl.pallas_call(
        kernel,
        out_shape=jax.ShapeDtypeStruct((b, n, dim), x.dtype),
        grid=(b,),
        in_specs=[
            pl.BlockSpec((None, n, dim), lambda bi: (bi, 0, 0)),    # x (per batch)
            pl.BlockSpec((dim, proj_cols), lambda bi: (0, 0)),      # fused Wproj (resident)
            pl.BlockSpec((dim, dim), lambda bi: (0, 0)),            # Wout^T (resident)
            pl.BlockSpec((1, dim), lambda bi: (0, 0)),              # b_out  (resident)
            pl.BlockSpec((heads, n, n), lambda bi: (0, 0, 0)),      # rel bias (resident)
        ],
        out_specs=pl.BlockSpec((None, n, dim), lambda bi: (bi, 0, 0)),
        compiler_params=pltpu.CompilerParams(dimension_semantics=("parallel",)),
    )(x, prepared["w_proj_t"], prepared["w_out_t"], prepared["b_out_2d"], rel_bias)


# ----------------------------- pure-JAX reference -----------------------------


def attention_reference(x, params, *, heads, dim_qk, max_pos_emb):
    b, n, dim = x.shape
    dv = dim // heads
    scale = dim_qk ** (-0.5)
    qk = x @ params["w_qk"].T
    v = x @ params["w_v"].T
    q, k = jnp.split(qk, 2, axis=-1)
    to_bhnd = lambda t, d: t.reshape(b, n, heads, d).transpose(0, 2, 1, 3)
    q, k, v = to_bhnd(q, dim_qk), to_bhnd(k, dim_qk), to_bhnd(v, dv)
    dots = jnp.einsum("bhid,bhjd->bhij", q, k) * scale
    seq = jnp.arange(n)
    dist = jnp.clip(seq[None, :] - seq[:, None], -max_pos_emb, max_pos_emb) + max_pos_emb
    dots = dots + params["conv"][:, dist][None]
    attn = jax.nn.softmax(dots, axis=-1)
    out = jnp.einsum("bhij,bhjd->bhid", attn, v)
    out = out.transpose(0, 2, 1, 3).reshape(b, n, dim)
    return out @ params["w_out"].T + params["b_out"]


# ---------------------------------- main ---------------------------------------


if __name__ == "__main__":
    # Small shapes consistent with the module.
    batch, seq_len, dim = 2, 16, 32
    heads, dim_qk, max_pos_emb = 4, 16, 10

    key = jax.random.PRNGKey(0)
    k_x, k1, k2, k3, k4, k5 = jax.random.split(key, 6)

    def lin_init(k, out_dim, in_dim):
        bound = 1.0 / (in_dim ** 0.5)
        return jax.random.uniform(k, (out_dim, in_dim), jnp.float32, -bound, bound)

    params = {
        "w_qk": lin_init(k1, dim_qk * heads * 2, dim),   # to_qk (no bias)
        "w_v": lin_init(k2, dim, dim),                   # to_v  (no bias)
        "w_out": lin_init(k3, dim, dim),                 # to_out weight
        "b_out": jax.random.uniform(
            k4, (dim,), jnp.float32, -1.0 / dim ** 0.5, 1.0 / dim ** 0.5),
        # Module __init__ zeros `conv`; use small deterministic values here so
        # the relative-position-bias path is actually exercised.
        "conv": 0.1 * jax.random.normal(k5, (heads, 2 * max_pos_emb + 1), jnp.float32),
    }

    x = jax.random.normal(k_x, (batch, seq_len, dim), jnp.float32)
    mask = None  # unused by the reference forward (dropout=0.0 as well)

    prepared = prepare_params(params, heads=heads, dim_qk=dim_qk)
    out = attention_forward(x, prepared, heads=heads, dim_qk=dim_qk,
                            max_pos_emb=max_pos_emb)
    out = jax.block_until_ready(out)

    ref = attention_reference(x, params, heads=heads, dim_qk=dim_qk,
                              max_pos_emb=max_pos_emb)
    assert out.shape == (batch, seq_len, dim)
    assert jnp.allclose(out, ref, atol=1e-4, rtol=1e-4), "mismatch vs JAX reference"

    print("KERNEL_OK")
</pallas_src>

<mosaic_0001>
module attributes {stable_mosaic.version = 11 : i64} {
  func.func @_fused_attention_kernel(%arg0: i32, %arg1: memref<1x16x32xf32, #tpu.memory_space<vmem>>, %arg2: memref<32x160xf32, #tpu.memory_space<vmem>>, %arg3: memref<32x32xf32, #tpu.memory_space<vmem>>, %arg4: memref<1x32xf32, #tpu.memory_space<vmem>>, %arg5: memref<4x16x16xf32, #tpu.memory_space<vmem>>, %arg6: memref<1x16x32xf32, #tpu.memory_space<vmem>>) attributes {dimension_semantics = [#tpu.dimension_semantics<parallel>], iteration_bounds = array<i64: 2>, scalar_prefetch = 0 : i64, scratch_operands = 0 : i64, tpu.core_type = #tpu.core_type<tc>, window_params = [{transform_indices = @transform_0, window_bounds = array<i64: 1, 16, 32>}, {pipeline_mode = #tpu.pipeline_mode<synchronous>, transform_indices = @transform_1, window_bounds = array<i64: 32, 160>}, {pipeline_mode = #tpu.pipeline_mode<synchronous>, transform_indices = @transform_2, window_bounds = array<i64: 32, 32>}, {pipeline_mode = #tpu.pipeline_mode<synchronous>, transform_indices = @transform_3, window_bounds = array<i64: 1, 32>}, {pipeline_mode = #tpu.pipeline_mode<synchronous>, transform_indices = @transform_4, window_bounds = array<i64: 4, 16, 16>}, {transform_indices = @transform_5, window_bounds = array<i64: 1, 16, 32>}]} {
    %c0 = arith.constant 0 : index
    %c0_0 = arith.constant 0 : index
    %c0_1 = arith.constant 0 : index
    %0 = vector.load %arg1[%c0, %c0_0, %c0_1] : memref<1x16x32xf32, #tpu.memory_space<vmem>>, vector<1x16x32xf32>
    %1 = vector.shape_cast %0 : vector<1x16x32xf32> to vector<16x32xf32>
    %c0_2 = arith.constant 0 : index
    %c0_3 = arith.constant 0 : index
    %2 = vector.load %arg2[%c0_2, %c0_3] : memref<32x160xf32, #tpu.memory_space<vmem>>, vector<32x160xf32>
    %cst = arith.constant dense<0.000000e+00> : vector<16x160xf32>
    %3 = tpu.matmul %1, %2, %cst {dimension_numbers = #tpu.dot_dimension_numbers<[1], [0], [0], [1], [0, 0, 1, 1], [], []>} : vector<16x32xf32>, vector<32x160xf32>, vector<16x160xf32> -> vector<16x160xf32>
    %4 = vector.extract_strided_slice %3 {offsets = [0, 0], sizes = [16, 16], strides = [1, 1]} : vector<16x160xf32> to vector<16x16xf32>
    %5 = vector.extract_strided_slice %3 {offsets = [0, 64], sizes = [16, 16], strides = [1, 1]} : vector<16x160xf32> to vector<16x16xf32>
    %6 = vector.extract_strided_slice %3 {offsets = [0, 128], sizes = [16, 8], strides = [1, 1]} : vector<16x160xf32> to vector<16x8xf32>
    %cst_4 = arith.constant dense<0.000000e+00> : vector<16x16xf32>
    %7 = tpu.matmul %4, %5, %cst_4 {dimension_numbers = #tpu.dot_dimension_numbers<[1], [1], [0], [0], [0, 0, 1, 0], [], []>} : vector<16x16xf32>, vector<16x16xf32>, vector<16x16xf32> -> vector<16x16xf32>
    %c0_5 = arith.constant 0 : index
    %c0_6 = arith.constant 0 : index
    %c0_7 = arith.constant 0 : index
    %8 = vector.load %arg5[%c0_5, %c0_6, %c0_7] : memref<4x16x16xf32, #tpu.memory_space<vmem>>, vector<1x16x16xf32>
    %9 = vector.shape_cast %8 : vector<1x16x16xf32> to vector<16x16xf32>
    %10 = arith.addf %7, %9 : vector<16x16xf32>
    %cst_8 = arith.constant dense<0xFF800000> : vector<16xf32>
    %11 = vector.multi_reduction <maximumf>, %10, %cst_8 [1] : vector<16x16xf32> to vector<16xf32>
    %12 = vector.shape_cast %11 : vector<16xf32> to vector<16x1xf32>
    %13 = vector.broadcast %12 : vector<16x1xf32> to vector<16x16xf32>
    %14 = arith.subf %10, %13 : vector<16x16xf32>
    %15 = math.exp %14 : vector<16x16xf32>
    %cst_9 = arith.constant dense<0.000000e+00> : vector<16xf32>
    %16 = vector.multi_reduction <add>, %15, %cst_9 [1] : vector<16x16xf32> to vector<16xf32>
    %17 = vector.shape_cast %16 : vector<16xf32> to vector<16x1xf32>
    %18 = tpu.reciprocal %17 : vector<16x1xf32> -> vector<16x1xf32>
    %19 = vector.broadcast %18 : vector<16x1xf32> to vector<16x16xf32>
    %20 = arith.mulf %15, %19 : vector<16x16xf32>
    %cst_10 = arith.constant dense<0.000000e+00> : vector<16x8xf32>
    %21 = tpu.matmul %20, %6, %cst_10 {dimension_numbers = #tpu.dot_dimension_numbers<[1], [0], [0], [1], [0, 0, 1, 1], [], []>} : vector<16x16xf32>, vector<16x8xf32>, vector<16x8xf32> -> vector<16x8xf32>
    %22 = vector.extract_strided_slice %3 {offsets = [0, 16], sizes = [16, 16], strides = [1, 1]} : vector<16x160xf32> to vector<16x16xf32>
    %23 = vector.extract_strided_slice %3 {offsets = [0, 80], sizes = [16, 16], strides = [1, 1]} : vector<16x160xf32> to vector<16x16xf32>
    %24 = vector.extract_strided_slice %3 {offsets = [0, 136], sizes = [16, 8], strides = [1, 1]} : vector<16x160xf32> to vector<16x8xf32>
    %cst_11 = arith.constant dense<0.000000e+00> : vector<16x16xf32>
    %25 = tpu.matmul %22, %23, %cst_11 {dimension_numbers = #tpu.dot_dimension_numbers<[1], [1], [0], [0], [0, 0, 1, 0], [], []>} : vector<16x16xf32>, vector<16x16xf32>, vector<16x16xf32> -> vector<16x16xf32>
    %c1 = arith.constant 1 : index
    %c0_12 = arith.constant 0 : index
    %c0_13 = arith.constant 0 : index
    %26 = vector.load %arg5[%c1, %c0_12, %c0_13] : memref<4x16x16xf32, #tpu.memory_space<vmem>>, vector<1x16x16xf32>
    %27 = vector.shape_cast %26 : vector<1x16x16xf32> to vector<16x16xf32>
    %28 = arith.addf %25, %27 : vector<16x16xf32>
    %cst_14 = arith.constant dense<0xFF800000> : vector<16xf32>
    %29 = vector.multi_reduction <maximumf>, %28, %cst_14 [1] : vector<16x16xf32> to vector<16xf32>
    %30 = vector.shape_cast %29 : vector<16xf32> to vector<16x1xf32>
    %31 = vector.broadcast %30 : vector<16x1xf32> to vector<16x16xf32>
    %32 = arith.subf %28, %31 : vector<16x16xf32>
    %33 = math.exp %32 : vector<16x16xf32>
    %cst_15 = arith.constant dense<0.000000e+00> : vector<16xf32>
    %34 = vector.multi_reduction <add>, %33, %cst_15 [1] : vector<16x16xf32> to vector<16xf32>
    %35 = vector.shape_cast %34 : vector<16xf32> to vector<16x1xf32>
    %36 = tpu.reciprocal %35 : vector<16x1xf32> -> vector<16x1xf32>
    %37 = vector.broadcast %36 : vector<16x1xf32> to vector<16x16xf32>
    %38 = arith.mulf %33, %37 : vector<16x16xf32>
    %cst_16 = arith.constant dense<0.000000e+00> : vector<16x8xf32>
    %39 = tpu.matmul %38, %24, %cst_16 {dimension_numbers = #tpu.dot_dimension_numbers<[1], [0], [0], [1], [0, 0, 1, 1], [], []>} : vector<16x16xf32>, vector<16x8xf32>, vector<16x8xf32> -> vector<16x8xf32>
    %40 = vector.extract_strided_slice %3 {offsets = [0, 32], sizes = [16, 16], strides = [1, 1]} : vector<16x160xf32> to vector<16x16xf32>
    %41 = vector.extract_strided_slice %3 {offsets = [0, 96], sizes = [16, 16], strides = [1, 1]} : vector<16x160xf32> to vector<16x16xf32>
    %42 = vector.extract_strided_slice %3 {offsets = [0, 144], sizes = [16, 8], strides = [1, 1]} : vector<16x160xf32> to vector<16x8xf32>
    %cst_17 = arith.constant dense<0.000000e+00> : vector<16x16xf32>
    %43 = tpu.matmul %40, %41, %cst_17 {dimension_numbers = #tpu.dot_dimension_numbers<[1], [1], [0], [0], [0, 0, 1, 0], [], []>} : vector<16x16xf32>, vector<16x16xf32>, vector<16x16xf32> -> vector<16x16xf32>
    %c2 = arith.constant 2 : index
    %c0_18 = arith.constant 0 : index
    %c0_19 = arith.constant 0 : index
    %44 = vector.load %arg5[%c2, %c0_18, %c0_19] : memref<4x16x16xf32, #tpu.memory_space<vmem>>, vector<1x16x16xf32>
    %45 = vector.shape_cast %44 : vector<1x16x16xf32> to vector<16x16xf32>
    %46 = arith.addf %43, %45 : vector<16x16xf32>
    %cst_20 = arith.constant dense<0xFF800000> : vector<16xf32>
    %47 = vector.multi_reduction <maximumf>, %46, %cst_20 [1] : vector<16x16xf32> to vector<16xf32>
    %48 = vector.shape_cast %47 : vector<16xf32> to vector<16x1xf32>
    %49 = vector.broadcast %48 : vector<16x1xf32> to vector<16x16xf32>
    %50 = arith.subf %46, %49 : vector<16x16xf32>
    %51 = math.exp %50 : vector<16x16xf32>
    %cst_21 = arith.constant dense<0.000000e+00> : vector<16xf32>
    %52 = vector.multi_reduction <add>, %51, %cst_21 [1] : vector<16x16xf32> to vector<16xf32>
    %53 = vector.shape_cast %52 : vector<16xf32> to vector<16x1xf32>
    %54 = tpu.reciprocal %53 : vector<16x1xf32> -> vector<16x1xf32>
    %55 = vector.broadcast %54 : vector<16x1xf32> to vector<16x16xf32>
    %56 = arith.mulf %51, %55 : vector<16x16xf32>
    %cst_22 = arith.constant dense<0.000000e+00> : vector<16x8xf32>
    %57 = tpu.matmul %56, %42, %cst_22 {dimension_numbers = #tpu.dot_dimension_numbers<[1], [0], [0], [1], [0, 0, 1, 1], [], []>} : vector<16x16xf32>, vector<16x8xf32>, vector<16x8xf32> -> vector<16x8xf32>
    %58 = vector.extract_strided_slice %3 {offsets = [0, 48], sizes = [16, 16], strides = [1, 1]} : vector<16x160xf32> to vector<16x16xf32>
    %59 = vector.extract_strided_slice %3 {offsets = [0, 112], sizes = [16, 16], strides = [1, 1]} : vector<16x160xf32> to vector<16x16xf32>
    %60 = vector.extract_strided_slice %3 {offsets = [0, 152], sizes = [16, 8], strides = [1, 1]} : vector<16x160xf32> to vector<16x8xf32>
    %cst_23 = arith.constant dense<0.000000e+00> : vector<16x16xf32>
    %61 = tpu.matmul %58, %59, %cst_23 {dimension_numbers = #tpu.dot_dimension_numbers<[1], [1], [0], [0], [0, 0, 1, 0], [], []>} : vector<16x16xf32>, vector<16x16xf32>, vector<16x16xf32> -> vector<16x16xf32>
    %c3 = arith.constant 3 : index
    %c0_24 = arith.constant 0 : index
    %c0_25 = arith.constant 0 : index
    %62 = vector.load %arg5[%c3, %c0_24, %c0_25] : memref<4x16x16xf32, #tpu.memory_space<vmem>>, vector<1x16x16xf32>
    %63 = vector.shape_cast %62 : vector<1x16x16xf32> to vector<16x16xf32>
    %64 = arith.addf %61, %63 : vector<16x16xf32>
    %cst_26 = arith.constant dense<0xFF800000> : vector<16xf32>
    %65 = vector.multi_reduction <maximumf>, %64, %cst_26 [1] : vector<16x16xf32> to vector<16xf32>
    %66 = vector.shape_cast %65 : vector<16xf32> to vector<16x1xf32>
    %67 = vector.broadcast %66 : vector<16x1xf32> to vector<16x16xf32>
    %68 = arith.subf %64, %67 : vector<16x16xf32>
    %69 = math.exp %68 : vector<16x16xf32>
    %cst_27 = arith.constant dense<0.000000e+00> : vector<16xf32>
    %70 = vector.multi_reduction <add>, %69, %cst_27 [1] : vector<16x16xf32> to vector<16xf32>
    %71 = vector.shape_cast %70 : vector<16xf32> to vector<16x1xf32>
    %72 = tpu.reciprocal %71 : vector<16x1xf32> -> vector<16x1xf32>
    %73 = vector.broadcast %72 : vector<16x1xf32> to vector<16x16xf32>
    %74 = arith.mulf %69, %73 : vector<16x16xf32>
    %cst_28 = arith.constant dense<0.000000e+00> : vector<16x8xf32>
    %75 = tpu.matmul %74, %60, %cst_28 {dimension_numbers = #tpu.dot_dimension_numbers<[1], [0], [0], [1], [0, 0, 1, 1], [], []>} : vector<16x16xf32>, vector<16x8xf32>, vector<16x8xf32> -> vector<16x8xf32>
    %76 = tpu.concatenate %21, %39, %57, %75 in 1 : vector<16x8xf32>, vector<16x8xf32>, vector<16x8xf32>, vector<16x8xf32> -> vector<16x32xf32>
    %c0_29 = arith.constant 0 : index
    %c0_30 = arith.constant 0 : index
    %77 = vector.load %arg3[%c0_29, %c0_30] : memref<32x32xf32, #tpu.memory_space<vmem>>, vector<32x32xf32>
    %cst_31 = arith.constant dense<0.000000e+00> : vector<16x32xf32>
    %78 = tpu.matmul %76, %77, %cst_31 {dimension_numbers = #tpu.dot_dimension_numbers<[1], [0], [0], [1], [0, 0, 1, 1], [], []>} : vector<16x32xf32>, vector<32x32xf32>, vector<16x32xf32> -> vector<16x32xf32>
    %c0_32 = arith.constant 0 : index
    %c0_33 = arith.constant 0 : index
    %79 = vector.load %arg4[%c0_32, %c0_33] : memref<1x32xf32, #tpu.memory_space<vmem>>, vector<1x32xf32>
    %80 = vector.broadcast %79 : vector<1x32xf32> to vector<16x32xf32>
    %81 = arith.addf %78, %80 : vector<16x32xf32>
    %c0_34 = arith.constant 0 : index
    %c0_35 = arith.constant 0 : index
    %c0_36 = arith.constant 0 : index
    %82 = vector.load %arg6[%c0_34, %c0_35, %c0_36] : memref<1x16x32xf32, #tpu.memory_space<vmem>>, vector<1x16x32xf32>
    %83 = vector.shape_cast %82 : vector<1x16x32xf32> to vector<16x32xf32>
    %84 = vector.shape_cast %81 : vector<16x32xf32> to vector<1x16x32xf32>
    tpu.vector_store %arg6[%c0_34, %c0_35, %c0_36], %84 {strides = array<i32>} : memref<1x16x32xf32, #tpu.memory_space<vmem>>, vector<1x16x32xf32>,
    return
  }
  func.func @transform_0(%arg0: i32) -> (i32, i32, i32) {
    %c0_i32 = arith.constant 0 : i32
    %c0_i32_0 = arith.constant 0 : i32
    %c0_i32_1 = arith.constant 0 : i32
    return %arg0, %c0_i32, %c0_i32_0 : i32, i32, i32
  }
  func.func @transform_1(%arg0: i32) -> (i32, i32) {
    %c0_i32 = arith.constant 0 : i32
    %c0_i32_0 = arith.constant 0 : i32
    %c0_i32_1 = arith.constant 0 : i32
    return %c0_i32, %c0_i32_0 : i32, i32
  }
  func.func @transform_2(%arg0: i32) -> (i32, i32) {
    %c0_i32 = arith.constant 0 : i32
    %c0_i32_0 = arith.constant 0 : i32
    %c0_i32_1 = arith.constant 0 : i32
    return %c0_i32, %c0_i32_0 : i32, i32
  }
  func.func @transform_3(%arg0: i32) -> (i32, i32) {
    %c0_i32 = arith.constant 0 : i32
    %c0_i32_0 = arith.constant 0 : i32
    %c0_i32_1 = arith.constant 0 : i32
    return %c0_i32, %c0_i32_0 : i32, i32
  }
  func.func @transform_4(%arg0: i32) -> (i32, i32, i32) {
    %c0_i32 = arith.constant 0 : i32
    %c0_i32_0 = arith.constant 0 : i32
    %c0_i32_1 = arith.constant 0 : i32
    %c0_i32_2 = arith.constant 0 : i32
    return %c0_i32, %c0_i32_0, %c0_i32_1 : i32, i32, i32
  }
  func.func @transform_5(%arg0: i32) -> (i32, i32, i32) {
    %c0_i32 = arith.constant 0 : i32
    %c0_i32_0 = arith.constant 0 : i32
    %c0_i32_1 = arith.constant 0 : i32
    return %arg0, %c0_i32, %c0_i32_0 : i32, i32, i32
  }
}

</mosaic_0001>

<llo_original>
// kernel: tpu_custom_call.1
$region0: #{tpu_custom_call.1}
  #allocation0 [shape = 'u32[]', space=smem, size = 0x4, offset = 0x4, fixed_abs, tag = 'smem constant byte address 0x4 - core index']
  #allocation1 [shape = 'u32[72,128]{1,0:T(1,128)}', space=vmem, size = 0x9000, scoped, tag = 'internal scratch']
  %s0 = inlined_call_operand.hbm [shape: f32[2,16,32], index: 0, kind: input, shape index: {}]
  %s1 = inlined_call_operand.hbm [shape: f32[32,160], index: 1, kind: input, shape index: {}]
  %s2 = inlined_call_operand.hbm [shape: f32[32,32], index: 2, kind: input, shape index: {}]
  %s3 = inlined_call_operand.vmem [shape: f32[1,32], index: 3, kind: input, shape index: {}]
  %s4 = inlined_call_operand.hbm [shape: f32[4,16,16], index: 4, kind: input, shape index: {}]
  %s5 = inlined_call_operand.hbm [shape: f32[2,16,32], index: 5, kind: output, shape index: {}]
  %s6 = sld [smem:[#allocation0]]
  $region69: #{tpu_custom_call.1} parent=0
    _
  %s8 = ssub.s32 1, %s6
  %s9 = scalar_select 0, %s8, %s6
  $region1: #{tpu_custom_call.1} parent=0
    #allocation2 [shape = 'u8[16384]{0}', space=vmem, size = 0x4000, scoped, tag = 'input window, operand 0']
    #allocation3 [shape = 's32[2]{0}', space=sflag, size = 0x8, scoped, tag = 'scoped memory for tpu_custom_call.1']
    #allocation4 [shape = 's32[2]{0}', space=sflag, size = 0x8, scoped, tag = 'scoped memory for tpu_custom_call.1']
    #allocation5 [shape = 'u8[32768]{0}', space=vmem, size = 0x8000, scoped, tag = 'input window, operand 1, single buffered']
    #allocation6 [shape = 's32[1]{0}', space=sflag, size = 0x4, scoped, tag = 'scoped memory for tpu_custom_call.1']
    #allocation7 [shape = 'u8[16384]{0}', space=vmem, size = 0x4000, scoped, tag = 'input window, operand 2, single buffered']
    #allocation8 [shape = 'u8[32768]{0}', space=vmem, size = 0x8000, scoped, tag = 'input window, operand 4, single buffered']
    #allocation9 [shape = 's32[1]{0}', space=sflag, size = 0x4, scoped, tag = 'scoped memory for tpu_custom_call.1']
    #allocation10 [shape = 'u8[16384]{0}', space=vmem, size = 0x4000, scoped, tag = 'output window, operand 0']
    %10 = vsyncpa [#allocation3], 0
    %s11 = scalar_lea.sflag [#allocation3], 1
    %12 = vsyncpa %s11, 0
    %13 = vsyncpa [#allocation6], 0
    %14 = vsyncpa [#allocation9], 0
    %15 = vsyncpa [#allocation4], 0
    %s16 = scalar_lea.sflag [#allocation4], 1
    %17 = vsyncpa %s16, 0
    loop: start=0, step=1, limit=4
    $region2: #{tpu_custom_call.1} parent=1 // loop_pre_header
      _
    $region3: #{tpu_custom_call.1} parent=1 // loop_header
      %s19 = sphi 0, %s23
      %p20 = scmp.ge.s32.totalorder %s19, 4
      %s29 = sphi 0, %s31
      %s32 = sphi 0, %s29
      %s33 = sphi 0, %s32
      %s49 = sphi 0, %s33
      %s53 = sphi 0, %s53
      %s55 = sphi 0, %s53
      %s56 = sphi 0, %s55
      %s70 = sphi 0, %s56
      %s74 = sphi 0, %s74
      %s76 = sphi 0, %s74
      %s77 = sphi 0, %s76
      %s91 = sphi 0, %s77
      %s95 = sphi 0, %s95
      %s97 = sphi 0, %s95
      %s98 = sphi 0, %s97
      %s112 = sphi 0, %s98
      %s116 = sphi 0, %s116
      %s118 = sphi 0, %s116
      %s119 = sphi 0, %s118
      %s133 = sphi 0, %s119
      %s139 = sphi 0, %s141
      %s142 = sphi 0, %s139
      %s143 = sphi 0, %s142
      %s159 = sphi 0, %s143
    $region4: #{tpu_custom_call.1} parent=1 // loop_header_branch
      %22 = sbr.rel (%p20) target = $region8
    $region5: #{tpu_custom_call.1} parent=1 // loop_body
      %s24 = ssub.s32 %s19, 1
      %s25 = ssub.s32 %s19, 2
      %s26 = sadd.s32 %s19, 1
      %s27 = ssub.s32 %s19, %s26
      %p28 = scmp.eq.s32.totalorder %s27, 0
      %s30 = sadd.s32 %s29, 1
      %s31 = scalar_select %p28, %s29, %s30
      %p34 = pneg %p28
      %p35 = scmp.eq.s32.totalorder %s19, 1
      %p36 = por %p34, %p35
      %p37 = scmp.ne.s32.totalorder %s29, %s32
      %p38 = scmp.eq.s32.totalorder %s19, 0
      %p39 = por %p37, %p38
      %p40 = scmp.ne.s32.totalorder %s29, %s32
      %p41 = scmp.eq.s32.totalorder %s24, 1
      %p42 = por %p40, %p41
      %p43 = scmp.ne.s32.totalorder %s32, %s33
      %p44 = scmp.eq.s32.totalorder %s24, 0
      %p45 = por %p43, %p44
      %p46 = scmp.ne.s32.totalorder %s32, %s33
      %p47 = scmp.eq.s32.totalorder %s25, 1
      %p48 = por %p46, %p47
      %p50 = scmp.ne.s32.totalorder %s33, %s49
      %p51 = scmp.eq.s32.totalorder %s25, 0
      %p52 = por %p50, %p51
      %s54 = sadd.s32 %s53, 1
      %p57 = scmp.eq.s32.totalorder %s19, 1
      %p58 = scmp.ne.s32.totalorder %s53, %s55
      %p59 = scmp.eq.s32.totalorder %s19, 0
      %p60 = por %p58, %p59
      %p61 = scmp.ne.s32.totalorder %s53, %s55
      %p62 = scmp.eq.s32.totalorder %s24, 1
      %p63 = por %p61, %p62
      %p64 = scmp.ne.s32.totalorder %s55, %s56
      %p65 = scmp.eq.s32.totalorder %s24, 0
      %p66 = por %p64, %p65
      %p67 = scmp.ne.s32.totalorder %s55, %s56
      %p68 = scmp.eq.s32.totalorder %s25, 1
      %p69 = por %p67, %p68
      %p71 = scmp.ne.s32.totalorder %s56, %s70
      %p72 = scmp.eq.s32.totalorder %s25, 0
      %p73 = por %p71, %p72
      %s75 = sadd.s32 %s74, 1
      %p78 = scmp.eq.s32.totalorder %s19, 1
      %p79 = scmp.ne.s32.totalorder %s74, %s76
      %p80 = scmp.eq.s32.totalorder %s19, 0
      %p81 = por %p79, %p80
      %p82 = scmp.ne.s32.totalorder %s74, %s76
      %p83 = scmp.eq.s32.totalorder %s24, 1
      %p84 = por %p82, %p83
      %p85 = scmp.ne.s32.totalorder %s76, %s77
      %p86 = scmp.eq.s32.totalorder %s24, 0
      %p87 = por %p85, %p86
      %p88 = scmp.ne.s32.totalorder %s76, %s77
      %p89 = scmp.eq.s32.totalorder %s25, 1
      %p90 = por %p88, %p89
      %p92 = scmp.ne.s32.totalorder %s77, %s91
      %p93 = scmp.eq.s32.totalorder %s25, 0
      %p94 = por %p92, %p93
      %s96 = sadd.s32 %s95, 1
      %p99 = scmp.eq.s32.totalorder %s19, 1
      %p100 = scmp.ne.s32.totalorder %s95, %s97
      %p101 = scmp.eq.s32.totalorder %s19, 0
      %p102 = por %p100, %p101
      %p103 = scmp.ne.s32.totalorder %s95, %s97
      %p104 = scmp.eq.s32.totalorder %s24, 1
      %p105 = por %p103, %p104
      %p106 = scmp.ne.s32.totalorder %s97, %s98
      %p107 = scmp.eq.s32.totalorder %s24, 0
      %p108 = por %p106, %p107
      %p109 = scmp.ne.s32.totalorder %s97, %s98
      %p110 = scmp.eq.s32.totalorder %s25, 1
      %p111 = por %p109, %p110
      %p113 = scmp.ne.s32.totalorder %s98, %s112
      %p114 = scmp.eq.s32.totalorder %s25, 0
      %p115 = por %p113, %p114
      %s117 = sadd.s32 %s116, 1
      %p120 = scmp.eq.s32.totalorder %s19, 1
      %p121 = scmp.ne.s32.totalorder %s116, %s118
      %p122 = scmp.eq.s32.totalorder %s19, 0
      %p123 = por %p121, %p122
      %p124 = scmp.ne.s32.totalorder %s116, %s118
      %p125 = scmp.eq.s32.totalorder %s24, 1
      %p126 = por %p124, %p125
      %p127 = scmp.ne.s32.totalorder %s118, %s119
      %p128 = scmp.eq.s32.totalorder %s24, 0
      %p129 = por %p127, %p128
      %p130 = scmp.ne.s32.totalorder %s118, %s119
      %p131 = scmp.eq.s32.totalorder %s25, 1
      %p132 = por %p130, %p131
      %p134 = scmp.ne.s32.totalorder %s119, %s133
      %p135 = scmp.eq.s32.totalorder %s25, 0
      %p136 = por %p134, %p135
      %s137 = ssub.s32 %s19, %s26
      %p138 = scmp.eq.s32.totalorder %s137, 0
      %s140 = sadd.s32 %s139, 1
      %s141 = scalar_select %p138, %s139, %s140
      %p144 = pneg %p138
      %p145 = scmp.eq.s32.totalorder %s19, 1
      %p146 = por %p144, %p145
      %p147 = scmp.ne.s32.totalorder %s139, %s142
      %p148 = scmp.eq.s32.totalorder %s19, 0
      %p149 = por %p147, %p148
      %p150 = scmp.ne.s32.totalorder %s139, %s142
      %p151 = scmp.eq.s32.totalorder %s24, 1
      %p152 = por %p150, %p151
      %p153 = scmp.ne.s32.totalorder %s142, %s143
      %p154 = scmp.eq.s32.totalorder %s24, 0
      %p155 = por %p153, %p154
      %p156 = scmp.ne.s32.totalorder %s142, %s143
      %p157 = scmp.eq.s32.totalorder %s25, 1
      %p158 = por %p156, %p157
      %p160 = scmp.ne.s32.totalorder %s143, %s159
      %p161 = scmp.eq.s32.totalorder %s25, 0
      %p162 = por %p160, %p161
      %p163 = scmp.le.s32.totalorder 1, %s19
      %p164 = scmp.lt.s32.totalorder %s19, 3
      %p165 = pnand %p163, %p164
      %p166 = pneg %p165
      // Predicated region
      $region9: #{tpu_custom_call.1} parent=5 // pred_check
        _
      $region10: #{tpu_custom_call.1} parent=5 // pred_check_branch
        %168 = sbr.rel (%p165) target = $region12
      $region11: #{tpu_custom_call.1} parent=5 // pred_region
        %s169 = ssub.s32 %s19, 1
        // Predicated region
        $region13: #{tpu_custom_call.1} parent=11 // pred_check
          %p170 = pneg %p66
        $region14: #{tpu_custom_call.1} parent=11 // pred_check_branch
          %172 = sbr.rel (%p170) target = $region16
        $region15: #{tpu_custom_call.1} parent=11 // pred_region
          %174 = vsyncadd [#allocation6], 0
          %s175 = sshll.u32 %s1, 4
          %s176 = int_to_ptr.hbm [resolvable:$true] %s175
          %s177 = sshll.u32 [#allocation5], 4
          %s178 = int_to_ptr.vmem [resolvable:$true] %s177
          %183 = dma.hbm_to_vmem [thread:$0]  %s176, 1024, %s178, [#allocation6], 256, 256, 16
        $region16: #{tpu_custom_call.1} parent=11 // pred_fallthru
          _
        // Predicated region
        $region17: #{tpu_custom_call.1} parent=11 // pred_check
          %p184 = pneg %p87
        $region18: #{tpu_custom_call.1} parent=11 // pred_check_branch
          %186 = sbr.rel (%p184) target = $region20
        $region19: #{tpu_custom_call.1} parent=11 // pred_region
          %188 = vsyncadd [#allocation6], 0
          %s189 = sshll.u32 %s2, 4
          %s190 = int_to_ptr.hbm [resolvable:$true] %s189
          %s191 = sshll.u32 [#allocation7], 4
          %s192 = int_to_ptr.vmem [resolvable:$true] %s191
          %197 = dma.hbm_to_vmem [thread:$0]  %s190, 512, %s192, [#allocation6], 128, 128, 8
        $region20: #{tpu_custom_call.1} parent=11 // pred_fallthru
          _
        // Predicated region
        $region21: #{tpu_custom_call.1} parent=11 // pred_check
          %p198 = pneg %p108
        $region22: #{tpu_custom_call.1} parent=11 // pred_check_branch
          %200 = sbr.rel (%p198) target = $region24
        $region23: #{tpu_custom_call.1} parent=11 // pred_region
          _
        $region24: #{tpu_custom_call.1} parent=11 // pred_fallthru
          _
        // Predicated region
        $region25: #{tpu_custom_call.1} parent=11 // pred_check
          %p201 = pneg %p129
        $region26: #{tpu_custom_call.1} parent=11 // pred_check_branch
          %203 = sbr.rel (%p201) target = $region28
        $region27: #{tpu_custom_call.1} parent=11 // pred_region
          %205 = vsyncadd [#allocation9], 0
          %s206 = sshll.u32 %s4, 4
          %s207 = int_to_ptr.hbm [resolvable:$true] %s206
          %s208 = sshll.u32 [#allocation8], 4
          %s209 = int_to_ptr.vmem [resolvable:$true] %s208
          %214 = dma.hbm_to_vmem [thread:$0]  %s207, 1024, %s209, [#allocation9], 128, 128, 8
        $region28: #{tpu_custom_call.1} parent=11 // pred_fallthru
          _
      $region12: #{tpu_custom_call.1} parent=5 // pred_fallthru
        _
      %p215 = scmp.lt.s32.totalorder %s19, 2
      // Predicated region
      $region29: #{tpu_custom_call.1} parent=5 // pred_check
        %p216 = pneg %p215
      $region30: #{tpu_custom_call.1} parent=5 // pred_check_branch
        %218 = sbr.rel (%p216) target = $region32
      $region31: #{tpu_custom_call.1} parent=5 // pred_region
        // Predicated region
        $region33: #{tpu_custom_call.1} parent=31 // pred_check
          %p219 = pneg %p39
        $region34: #{tpu_custom_call.1} parent=31 // pred_check_branch
          %221 = sbr.rel (%p219) target = $region36
        $region35: #{tpu_custom_call.1} parent=31 // pred_region
          %s222 = sand.u32 %s29, 1
          %s223 = scalar_lea.sflag [#allocation3], %s222
          %s224 = sand.u32 %s29, 1
          %s225 = smul.addr %s224, 16
          %s226 = scalar_lea.vmem [#allocation2], %s225
          %228 = vsyncadd %s223, 0
          %s229 = smul.addr %s19, 2
          %s230 = smul.addr %s229, 8
          %s231 = scalar_lea.hbm %s0, %s230
          %s232 = sshll.u32 %s231, 4
          %s233 = int_to_ptr.hbm [resolvable:$true] %s232
          %s234 = sshll.u32 %s226, 4
          %s235 = int_to_ptr.vmem [resolvable:$true] %s234
          %240 = dma.hbm_to_vmem [thread:$0]  %s233, 256, %s235, %s223, 128, 128, 8
        $region36: #{tpu_custom_call.1} parent=31 // pred_fallthru
          _
      $region32: #{tpu_custom_call.1} parent=5 // pred_fallthru
        _
      %p241 = scmp.le.s32.totalorder 1, %s19
      %p242 = scmp.lt.s32.totalorder %s19, 3
      %p243 = pnand %p241, %p242
      %p244 = pneg %p243
      // Predicated region
      $region37: #{tpu_custom_call.1} parent=5 // pred_check
        _
      $region38: #{tpu_custom_call.1} parent=5 // pred_check_branch
        %246 = sbr.rel (%p243) target = $region40
      $region39: #{tpu_custom_call.1} parent=5 // pred_region
        %s247 = ssub.s32 %s19, 1
        %s248 = sand.u32 %s32, 1
        %s249 = scalar_lea.sflag [#allocation3], %s248
        %s250 = sand.u32 %s32, 1
        %s251 = smul.addr %s250, 16
        %s252 = scalar_lea.vmem [#allocation2], %s251
        // Predicated region
        $region41: #{tpu_custom_call.1} parent=39 // pred_check
          %p253 = pneg %p45
        $region42: #{tpu_custom_call.1} parent=39 // pred_check_branch
          %255 = sbr.rel (%p253) target = $region44
        $region43: #{tpu_custom_call.1} parent=39 // pred_region
          %257 = dma.done %s249, 256
        $region44: #{tpu_custom_call.1} parent=39 // pred_fallthru
          _
        // Predicated region
        $region45: #{tpu_custom_call.1} parent=39 // pred_check
          %p258 = pneg %p66
        $region46: #{tpu_custom_call.1} parent=39 // pred_check_branch
          %260 = sbr.rel (%p258) target = $region48
        $region47: #{tpu_custom_call.1} parent=39 // pred_region
          %262 = dma.done [#allocation6], 1024
        $region48: #{tpu_custom_call.1} parent=39 // pred_fallthru
          _
        // Predicated region
        $region49: #{tpu_custom_call.1} parent=39 // pred_check
          %p263 = pneg %p87
        $region50: #{tpu_custom_call.1} parent=39 // pred_check_branch
          %265 = sbr.rel (%p263) target = $region52
        $region51: #{tpu_custom_call.1} parent=39 // pred_region
          %267 = dma.done [#allocation6], 512
        $region52: #{tpu_custom_call.1} parent=39 // pred_fallthru
          _
        // Predicated region
        $region53: #{tpu_custom_call.1} parent=39 // pred_check
          %p268 = pneg %p129
        $region54: #{tpu_custom_call.1} parent=39 // pred_check_branch
          %270 = sbr.rel (%p268) target = $region56
        $region55: #{tpu_custom_call.1} parent=39 // pred_region
          %272 = dma.done [#allocation9], 1024
        $region56: #{tpu_custom_call.1} parent=39 // pred_fallthru
          _
        %s273 = sand.u32 %s32, 1
        %s274 = scalar_lea.sflag [#allocation3], %s273
        %s275 = sand.u32 %s32, 1
        %s276 = smul.addr %s275, 16
        %s277 = scalar_lea.vmem [#allocation2], %s276
        %p278 = pneg %p45
        %p279 = pneg %p42
        %p280 = pneg %p66
        %p281 = pneg %p63
        %p282 = pneg %p87
        %p283 = pneg %p84
        %p284 = pneg %p108
        %p285 = pneg %p105
        %p286 = pneg %p129
        %p287 = pneg %p126
        %p288 = pneg %p155
        %p289 = pneg %p152
        %s290 = sand.u32 %s142, 1
        %s291 = scalar_lea.sflag [#allocation4], %s290
        %s292 = sand.u32 %s142, 1
        %s293 = smul.addr %s292, 16
        %s294 = scalar_lea.vmem [#allocation10], %s293
        %v295 = vld [vmem:[%s252] sm:$0xff]
        %v296 = vld [vmem:[%s252 + $0x8] sm:$0xff]
        %v297 = vld [vmem:[#allocation5] sm:$0xff]
        %v298 = vld [vmem:[#allocation5 + $0x8] sm:$0xff]
        %v299 = vld [vmem:[#allocation5 + $0x10] sm:$0xff]
        %v300 = vld [vmem:[#allocation5 + $0x18] sm:$0xff]
        %v301 = vld [vmem:[#allocation5 + $0x20] sm:$0xff]
        %v302 = vld [vmem:[#allocation5 + $0x28] sm:$0xff]
        %v303 = vld [vmem:[#allocation5 + $0x30] sm:$0xff]
        %v304 = vld [vmem:[#allocation5 + $0x38] sm:$0xff]
        %vm305 = vcmask 261120
        %v307 = vsel %vm305, %v295, 0
        %v310 = vsel %vm305, %v296, 0
        %312 = vmatpush.msra.mxu0 0.0
        %313 = vmatpush.msra.mxu0 0.0
        %314 = vmatpush.msra.mxu0 0.0
        %315 = vmatpush.msra.mxu0 0.0
        %316 = vmatpush.msra.mxu0 0.0
        %317 = vmatpush.msra.mxu0 0.0
        %318 = vmatpush.msra.mxu0 0.0
        %319 = vmatpush.msra.mxu0 0.0
        %320 = vmatpush.msra.mxu0 0.0
        %321 = vmatpush.msra.mxu0 0.0
        %322 = vmatpush.msra.mxu0 0.0
        %323 = vmatpush.msra.mxu0 0.0
        %324 = vmatpush.msra.mxu0 %v303
        %325 = vmatpush.msra.mxu0 %v301
        %326 = vmatpush.msra.mxu0 %v299
        %327 = vmatpush.msra.mxu0 %v297
        %328 = vmatmul.f32.gmra.mxu0 %v307
        %v329 = vpop.f32.mrf.mxu0
        %v330 = vadd.f32 0.0, %v329
        %331 = vmatmul.f32.gmra.mxu0 %v310
        %v332 = vpop.f32.mrf.mxu0
        %v333 = vadd.f32 0.0, %v332
        %334 = vdwg.mxu0
        %335 = vmatpush.msra.mxu0 0.0
        %336 = vmatpush.msra.mxu0 0.0
        %337 = vmatpush.msra.mxu0 0.0
        %338 = vmatpush.msra.mxu0 0.0
        %339 = vmatpush.msra.mxu0 0.0
        %340 = vmatpush.msra.mxu0 0.0
        %341 = vmatpush.msra.mxu0 0.0
        %342 = vmatpush.msra.mxu0 0.0
        %343 = vmatpush.msra.mxu0 0.0
        %344 = vmatpush.msra.mxu0 0.0
        %345 = vmatpush.msra.mxu0 0.0
        %346 = vmatpush.msra.mxu0 0.0
        %347 = vmatpush.msra.mxu0 %v304
        %348 = vmatpush.msra.mxu0 %v302
        %349 = vmatpush.msra.mxu0 %v300
        %350 = vmatpush.msra.mxu0 %v298
        %351 = vmatmul.f32.gmra.mxu0 %v307
        %v352 = vpop.f32.mrf.mxu0
        %v353 = vadd.f32 0.0, %v352
        %354 = vmatmul.f32.gmra.mxu0 %v310
        %v355 = vpop.f32.mrf.mxu0
        %v356 = vadd.f32 0.0, %v355
        %357 = vdwg.mxu0
        %v358 = vld [vmem:[#allocation8] sm:$0xff]
        %v359 = vld [vmem:[#allocation8 + $0x8] sm:$0xff]
        %362 = vrot.lane.b32.xlu0 %v330, 64
        %v363 = vpop.permute.xlu0 %362
        %364 = vrot.lane.b32.xlu0 %v333, 64
        %v365 = vpop.permute.xlu0 %364
        %vm366 = vcmask 130048
        %v367 = vsel %vm366, %v330, 0
        %v369 = vsel %vm366, %v333, 0
        %v371 = vsel %vm366, %v363, 0
        %v373 = vsel %vm366, %v365, 0
        %375 = vmatpush.xpose.msra.mxu0 0.0
        %376 = vmatpush.xpose.msra.mxu0 0.0
        %377 = vmatpush.xpose.msra.mxu0 0.0
        %378 = vmatpush.xpose.msra.mxu0 0.0
        %379 = vmatpush.xpose.msra.mxu0 0.0
        %380 = vmatpush.xpose.msra.mxu0 0.0
        %381 = vmatpush.xpose.msra.mxu0 0.0
        %382 = vmatpush.xpose.msra.mxu0 0.0
        %383 = vmatpush.xpose.msra.mxu0 0.0
        %384 = vmatpush.xpose.msra.mxu0 0.0
        %385 = vmatpush.xpose.msra.mxu0 0.0
        %386 = vmatpush.xpose.msra.mxu0 0.0
        %387 = vmatpush.xpose.msra.mxu0 0.0
        %388 = vmatpush.xpose.msra.mxu0 0.0
        %389 = vmatpush.xpose.msra.mxu0 %v373
        %390 = vmatpush.xpose.msra.mxu0 %v371
        %391 = vmatmul.f32.gmra.mxu0 %v367
        %v392 = vpop.f32.mrf.mxu0
        %v393 = vadd.f32 %v358, %v392
        %394 = vmatmul.f32.gmra.mxu0 %v369
        %v395 = vpop.f32.mrf.mxu0
        %v396 = vadd.f32 %v359, %v395
        %397 = vdwg.mxu0
        %v398 = vsel %vm366, %v393, -inf
        %399 = vmax.xlane.f32.xlu0 %v398
        %v400 = vpop.xlane.xlu0 %399
        %v401 = vsel %vm366, %v396, -inf
        %402 = vmax.xlane.f32.xlu0 %v401
        %v403 = vpop.xlane.xlu0 %402
        %v404 = vsub.f32 %v393, %v400
        %v405 = vsub.f32 %v396, %v403
        %v406 = vmul.f32 %v404, 1.442695
        %v407 = vpow.pop %v406
        %v408 = vmul.f32 %v405, 1.442695
        %v409 = vpow.pop %v408
        %v410 = vsel %vm366, %v407, 0.0
        %411 = vadd.xlane.f32.xlu0 %v410
        %v412 = vpop.xlane.xlu0 %411
        %v413 = vsel %vm366, %v409, 0.0
        %414 = vadd.xlane.f32.xlu0 %v413
        %v415 = vpop.xlane.xlu0 %414
        %v416 = vrcp.pop %v412
        %v417 = vmul.f32 %v412, %v416
        %v418 = vsub.f32 1.0, %v417
        %v419 = vmul.f32 %v416, %v418
        %v420 = vadd.f32 %v416, %v419
        %vm421 = vweird.f32 %v412
        %vm422 = vweird.f32 %v416
        %vm423 = vmor %vm421, %vm422
        %v424 = vsel %vm423, %v416, %v420
        %v425 = vand.u32 2147483647, %v412
        %vm426 = vcmp.eq.f32.partialorder %v425, 8.507059e+37
        %v427 = vand.u32 %v412, 2147483648
        %v428 = vor.u32 1.1754944e-38, %v427
        %v429 = vsel %vm426, %v428, %v424
        %v430 = vrcp.pop %v415
        %v431 = vmul.f32 %v415, %v430
        %v432 = vsub.f32 1.0, %v431
        %v433 = vmul.f32 %v430, %v432
        %v434 = vadd.f32 %v430, %v433
        %vm435 = vweird.f32 %v415
        %vm436 = vweird.f32 %v430
        %vm437 = vmor %vm435, %vm436
        %v438 = vsel %vm437, %v430, %v434
        %v439 = vand.u32 2147483647, %v415
        %vm440 = vcmp.eq.f32.partialorder %v439, 8.507059e+37
        %v441 = vand.u32 %v415, 2147483648
        %v442 = vor.u32 1.1754944e-38, %v441
        %v443 = vsel %vm440, %v442, %v438
        %v444 = vmul.f32 %v407, %v429
        %v445 = vmul.f32 %v409, %v443
        %v447 = vsel %vm366, %v444, 0
        %v450 = vsel %vm366, %v445, 0
        %452 = vmatpush.msra.mxu0 0.0
        %453 = vmatpush.msra.mxu0 0.0
        %454 = vmatpush.msra.mxu0 0.0
        %455 = vmatpush.msra.mxu0 0.0
        %456 = vmatpush.msra.mxu0 0.0
        %457 = vmatpush.msra.mxu0 0.0
        %458 = vmatpush.msra.mxu0 0.0
        %459 = vmatpush.msra.mxu0 0.0
        %460 = vmatpush.msra.mxu0 0.0
        %461 = vmatpush.msra.mxu0 0.0
        %462 = vmatpush.msra.mxu0 0.0
        %463 = vmatpush.msra.mxu0 0.0
        %464 = vmatpush.msra.mxu0 0.0
        %465 = vmatpush.msra.mxu0 0.0
        %466 = vmatpush.msra.mxu0 %v356
        %467 = vmatpush.msra.mxu0 %v353
        %468 = vmatmul.f32.gmra.mxu0 %v447
        %v469 = vpop.f32.mrf.mxu0
        %v470 = vadd.f32 0.0, %v469
        %471 = vmatmul.f32.gmra.mxu0 %v450
        %v472 = vpop.f32.mrf.mxu0
        %v473 = vadd.f32 0.0, %v472
        %474 = vdwg.mxu0
        %s475 = scalar_lea.vmem [#allocation8], 16
        %v476 = vld [vmem:[%s475] sm:$0xff]
        %v477 = vld [vmem:[%s475 + $0x8] sm:$0xff]
        %478 = vrot.lane.b32.xlu0 %v330, 112
        %v479 = vpop.permute.xlu0 %478
        %480 = vrot.lane.b32.xlu0 %v333, 112
        %v481 = vpop.permute.xlu0 %480
        %482 = vrot.lane.b32.xlu0 %v330, 48
        %v483 = vpop.permute.xlu0 %482
        %484 = vrot.lane.b32.xlu0 %v333, 48
        %v485 = vpop.permute.xlu0 %484
        %v486 = vsel %vm366, %v479, 0
        %v488 = vsel %vm366, %v481, 0
        %v490 = vsel %vm366, %v483, 0
        %v492 = vsel %vm366, %v485, 0
        %494 = vmatpush.xpose.msra.mxu0 0.0
        %495 = vmatpush.xpose.msra.mxu0 0.0
        %496 = vmatpush.xpose.msra.mxu0 0.0
        %497 = vmatpush.xpose.msra.mxu0 0.0
        %498 = vmatpush.xpose.msra.mxu0 0.0
        %499 = vmatpush.xpose.msra.mxu0 0.0
        %500 = vmatpush.xpose.msra.mxu0 0.0
        %501 = vmatpush.xpose.msra.mxu0 0.0
        %502 = vmatpush.xpose.msra.mxu0 0.0
        %503 = vmatpush.xpose.msra.mxu0 0.0
        %504 = vmatpush.xpose.msra.mxu0 0.0
        %505 = vmatpush.xpose.msra.mxu0 0.0
        %506 = vmatpush.xpose.msra.mxu0 0.0
        %507 = vmatpush.xpose.msra.mxu0 0.0
        %508 = vmatpush.xpose.msra.mxu0 %v492
        %509 = vmatpush.xpose.msra.mxu0 %v490
        %510 = vmatmul.f32.gmra.mxu0 %v486
        %v511 = vpop.f32.mrf.mxu0
        %v512 = vadd.f32 %v476, %v511
        %513 = vmatmul.f32.gmra.mxu0 %v488
        %v514 = vpop.f32.mrf.mxu0
        %v515 = vadd.f32 %v477, %v514
        %516 = vdwg.mxu0
        %v517 = vsel %vm366, %v512, -inf
        %518 = vmax.xlane.f32.xlu0 %v517
        %v519 = vpop.xlane.xlu0 %518
        %v520 = vsel %vm366, %v515, -inf
        %521 = vmax.xlane.f32.xlu0 %v520
        %v522 = vpop.xlane.xlu0 %521
        %v523 = vsub.f32 %v512, %v519
        %v524 = vsub.f32 %v515, %v522
        %v525 = vmul.f32 %v523, 1.442695
        %v526 = vpow.pop %v525
        %v527 = vmul.f32 %v524, 1.442695
        %v528 = vpow.pop %v527
        %v529 = vsel %vm366, %v526, 0.0
        %530 = vadd.xlane.f32.xlu0 %v529
        %v531 = vpop.xlane.xlu0 %530
        %v532 = vsel %vm366, %v528, 0.0
        %533 = vadd.xlane.f32.xlu0 %v532
        %v534 = vpop.xlane.xlu0 %533
        %v535 = vrcp.pop %v531
        %v536 = vmul.f32 %v531, %v535
        %v537 = vsub.f32 1.0, %v536
        %v538 = vmul.f32 %v535, %v537
        %v539 = vadd.f32 %v535, %v538
        %vm540 = vweird.f32 %v531
        %vm541 = vweird.f32 %v535
        %vm542 = vmor %vm540, %vm541
        %v543 = vsel %vm542, %v535, %v539
        %v544 = vand.u32 2147483647, %v531
        %vm545 = vcmp.eq.f32.partialorder %v544, 8.507059e+37
        %v546 = vand.u32 %v531, 2147483648
        %v547 = vor.u32 1.1754944e-38, %v546
        %v548 = vsel %vm545, %v547, %v543
        %v549 = vrcp.pop %v534
        %v550 = vmul.f32 %v534, %v549
        %v551 = vsub.f32 1.0, %v550
        %v552 = vmul.f32 %v549, %v551
        %v553 = vadd.f32 %v549, %v552
        %vm554 = vweird.f32 %v534
        %vm555 = vweird.f32 %v549
        %vm556 = vmor %vm554, %vm555
        %v557 = vsel %vm556, %v549, %v553
        %v558 = vand.u32 2147483647, %v534
        %vm559 = vcmp.eq.f32.partialorder %v558, 8.507059e+37
        %v560 = vand.u32 %v534, 2147483648
        %v561 = vor.u32 1.1754944e-38, %v560
        %v562 = vsel %vm559, %v561, %v557
        %v563 = vmul.f32 %v526, %v548
        %v564 = vmul.f32 %v528, %v562
        %567 = vrot.lane.b32.xlu0 %v353, 120
        %v568 = vpop.permute.xlu0 %567
        %569 = vrot.lane.b32.xlu0 %v356, 120
        %v570 = vpop.permute.xlu0 %569
        %v574 = vsel %vm366, %v563, 0
        %v577 = vsel %vm366, %v564, 0
        %579 = vmatpush.msra.mxu0 0.0
        %580 = vmatpush.msra.mxu0 0.0
        %581 = vmatpush.msra.mxu0 0.0
        %582 = vmatpush.msra.mxu0 0.0
        %583 = vmatpush.msra.mxu0 0.0
        %584 = vmatpush.msra.mxu0 0.0
        %585 = vmatpush.msra.mxu0 0.0
        %586 = vmatpush.msra.mxu0 0.0
        %587 = vmatpush.msra.mxu0 0.0
        %588 = vmatpush.msra.mxu0 0.0
        %589 = vmatpush.msra.mxu0 0.0
        %590 = vmatpush.msra.mxu0 0.0
        %591 = vmatpush.msra.mxu0 0.0
        %592 = vmatpush.msra.mxu0 0.0
        %593 = vmatpush.msra.mxu0 %v570
        %594 = vmatpush.msra.mxu0 %v568
        %595 = vmatmul.f32.gmra.mxu0 %v574
        %v596 = vpop.f32.mrf.mxu0
        %v597 = vadd.f32 0.0, %v596
        %598 = vmatmul.f32.gmra.mxu0 %v577
        %v599 = vpop.f32.mrf.mxu0
        %v600 = vadd.f32 0.0, %v599
        %601 = vdwg.mxu0
        %s602 = scalar_lea.vmem [#allocation8], 32
        %v603 = vld [vmem:[%s602] sm:$0xff]
        %v604 = vld [vmem:[%s602 + $0x8] sm:$0xff]
        %605 = vrot.lane.b32.xlu0 %v330, 96
        %v606 = vpop.permute.xlu0 %605
        %607 = vrot.lane.b32.xlu0 %v333, 96
        %v608 = vpop.permute.xlu0 %607
        %609 = vrot.lane.b32.xlu0 %v330, 32
        %v610 = vpop.permute.xlu0 %609
        %611 = vrot.lane.b32.xlu0 %v333, 32
        %v612 = vpop.permute.xlu0 %611
        %v613 = vsel %vm366, %v606, 0
        %v615 = vsel %vm366, %v608, 0
        %v617 = vsel %vm366, %v610, 0
        %v619 = vsel %vm366, %v612, 0
        %621 = vmatpush.xpose.msra.mxu0 0.0
        %622 = vmatpush.xpose.msra.mxu0 0.0
        %623 = vmatpush.xpose.msra.mxu0 0.0
        %624 = vmatpush.xpose.msra.mxu0 0.0
        %625 = vmatpush.xpose.msra.mxu0 0.0
        %626 = vmatpush.xpose.msra.mxu0 0.0
        %627 = vmatpush.xpose.msra.mxu0 0.0
        %628 = vmatpush.xpose.msra.mxu0 0.0
        %629 = vmatpush.xpose.msra.mxu0 0.0
        %630 = vmatpush.xpose.msra.mxu0 0.0
        %631 = vmatpush.xpose.msra.mxu0 0.0
        %632 = vmatpush.xpose.msra.mxu0 0.0
        %633 = vmatpush.xpose.msra.mxu0 0.0
        %634 = vmatpush.xpose.msra.mxu0 0.0
        %635 = vmatpush.xpose.msra.mxu0 %v619
        %636 = vmatpush.xpose.msra.mxu0 %v617
        %637 = vmatmul.f32.gmra.mxu0 %v613
        %v638 = vpop.f32.mrf.mxu0
        %v639 = vadd.f32 %v603, %v638
        %640 = vmatmul.f32.gmra.mxu0 %v615
        %v641 = vpop.f32.mrf.mxu0
        %v642 = vadd.f32 %v604, %v641
        %643 = vdwg.mxu0
        %v644 = vsel %vm366, %v639, -inf
        %645 = vmax.xlane.f32.xlu0 %v644
        %v646 = vpop.xlane.xlu0 %645
        %v647 = vsel %vm366, %v642, -inf
        %648 = vmax.xlane.f32.xlu0 %v647
        %v649 = vpop.xlane.xlu0 %648
        %v650 = vsub.f32 %v639, %v646
        %v651 = vsub.f32 %v642, %v649
        %v652 = vmul.f32 %v650, 1.442695
        %v653 = vpow.pop %v652
        %v654 = vmul.f32 %v651, 1.442695
        %v655 = vpow.pop %v654
        %v656 = vsel %vm366, %v653, 0.0
        %657 = vadd.xlane.f32.xlu0 %v656
        %v658 = vpop.xlane.xlu0 %657
        %v659 = vsel %vm366, %v655, 0.0
        %660 = vadd.xlane.f32.xlu0 %v659
        %v661 = vpop.xlane.xlu0 %660
        %v662 = vrcp.pop %v658
        %v663 = vmul.f32 %v658, %v662
        %v664 = vsub.f32 1.0, %v663
        %v665 = vmul.f32 %v662, %v664
        %v666 = vadd.f32 %v662, %v665
        %vm667 = vweird.f32 %v658
        %vm668 = vweird.f32 %v662
        %vm669 = vmor %vm667, %vm668
        %v670 = vsel %vm669, %v662, %v666
        %v671 = vand.u32 2147483647, %v658
        %vm672 = vcmp.eq.f32.partialorder %v671, 8.507059e+37
        %v673 = vand.u32 %v658, 2147483648
        %v674 = vor.u32 1.1754944e-38, %v673
        %v675 = vsel %vm672, %v674, %v670
        %v676 = vrcp.pop %v661
        %v677 = vmul.f32 %v661, %v676
        %v678 = vsub.f32 1.0, %v677
        %v679 = vmul.f32 %v676, %v678
        %v680 = vadd.f32 %v676, %v679
        %vm681 = vweird.f32 %v661
        %vm682 = vweird.f32 %v676
        %vm683 = vmor %vm681, %vm682
        %v684 = vsel %vm683, %v676, %v680
        %v685 = vand.u32 2147483647, %v661
        %vm686 = vcmp.eq.f32.partialorder %v685, 8.507059e+37
        %v687 = vand.u32 %v661, 2147483648
        %v688 = vor.u32 1.1754944e-38, %v687
        %v689 = vsel %vm686, %v688, %v684
        %v690 = vmul.f32 %v653, %v675
        %v691 = vmul.f32 %v655, %v689
        %692 = vrot.lane.b32.xlu0 %v353, 112
        %v693 = vpop.permute.xlu0 %692
        %694 = vrot.lane.b32.xlu0 %v356, 112
        %v695 = vpop.permute.xlu0 %694
        %v699 = vsel %vm366, %v690, 0
        %v702 = vsel %vm366, %v691, 0
        %704 = vmatpush.msra.mxu0 0.0
        %705 = vmatpush.msra.mxu0 0.0
        %706 = vmatpush.msra.mxu0 0.0
        %707 = vmatpush.msra.mxu0 0.0
        %708 = vmatpush.msra.mxu0 0.0
        %709 = vmatpush.msra.mxu0 0.0
        %710 = vmatpush.msra.mxu0 0.0
        %711 = vmatpush.msra.mxu0 0.0
        %712 = vmatpush.msra.mxu0 0.0
        %713 = vmatpush.msra.mxu0 0.0
        %714 = vmatpush.msra.mxu0 0.0
        %715 = vmatpush.msra.mxu0 0.0
        %716 = vmatpush.msra.mxu0 0.0
        %717 = vmatpush.msra.mxu0 0.0
        %718 = vmatpush.msra.mxu0 %v695
        %719 = vmatpush.msra.mxu0 %v693
        %720 = vmatmul.f32.gmra.mxu0 %v699
        %v721 = vpop.f32.mrf.mxu0
        %v722 = vadd.f32 0.0, %v721
        %723 = vmatmul.f32.gmra.mxu0 %v702
        %v724 = vpop.f32.mrf.mxu0
        %v725 = vadd.f32 0.0, %v724
        %726 = vdwg.mxu0
        %s727 = scalar_lea.vmem [#allocation8], 48
        %v728 = vld [vmem:[%s727] sm:$0xff]
        %v729 = vld [vmem:[%s727 + $0x8] sm:$0xff]
        %730 = vrot.lane.b32.xlu0 %v330, 80
        %v731 = vpop.permute.xlu0 %730
        %732 = vrot.lane.b32.xlu0 %v333, 80
        %v733 = vpop.permute.xlu0 %732
        %734 = vrot.lane.b32.xlu0 %v330, 16
        %v735 = vpop.permute.xlu0 %734
        %736 = vrot.lane.b32.xlu0 %v333, 16
        %v737 = vpop.permute.xlu0 %736
        %v738 = vsel %vm366, %v731, 0
        %v740 = vsel %vm366, %v733, 0
        %v742 = vsel %vm366, %v735, 0
        %v744 = vsel %vm366, %v737, 0
        %746 = vmatpush.xpose.msra.mxu0 0.0
        %747 = vmatpush.xpose.msra.mxu0 0.0
        %748 = vmatpush.xpose.msra.mxu0 0.0
        %749 = vmatpush.xpose.msra.mxu0 0.0
        %750 = vmatpush.xpose.msra.mxu0 0.0
        %751 = vmatpush.xpose.msra.mxu0 0.0
        %752 = vmatpush.xpose.msra.mxu0 0.0
        %753 = vmatpush.xpose.msra.mxu0 0.0
        %754 = vmatpush.xpose.msra.mxu0 0.0
        %755 = vmatpush.xpose.msra.mxu0 0.0
        %756 = vmatpush.xpose.msra.mxu0 0.0
        %757 = vmatpush.xpose.msra.mxu0 0.0
        %758 = vmatpush.xpose.msra.mxu0 0.0
        %759 = vmatpush.xpose.msra.mxu0 0.0
        %760 = vmatpush.xpose.msra.mxu0 %v744
        %761 = vmatpush.xpose.msra.mxu0 %v742
        %762 = vmatmul.f32.gmra.mxu0 %v738
        %v763 = vpop.f32.mrf.mxu0
        %v764 = vadd.f32 %v728, %v763
        %765 = vmatmul.f32.gmra.mxu0 %v740
        %v766 = vpop.f32.mrf.mxu0
        %v767 = vadd.f32 %v729, %v766
        %768 = vdwg.mxu0
        %v769 = vsel %vm366, %v764, -inf
        %770 = vmax.xlane.f32.xlu0 %v769
        %v771 = vpop.xlane.xlu0 %770
        %v772 = vsel %vm366, %v767, -inf
        %773 = vmax.xlane.f32.xlu0 %v772
        %v774 = vpop.xlane.xlu0 %773
        %v775 = vsub.f32 %v764, %v771
        %v776 = vsub.f32 %v767, %v774
        %v777 = vmul.f32 %v775, 1.442695
        %v778 = vpow.pop %v777
        %v779 = vmul.f32 %v776, 1.442695
        %v780 = vpow.pop %v779
        %v781 = vsel %vm366, %v778, 0.0
        %782 = vadd.xlane.f32.xlu0 %v781
        %v783 = vpop.xlane.xlu0 %782
        %v784 = vsel %vm366, %v780, 0.0
        %785 = vadd.xlane.f32.xlu0 %v784
        %v786 = vpop.xlane.xlu0 %785
        %v787 = vrcp.pop %v783
        %v788 = vmul.f32 %v783, %v787
        %v789 = vsub.f32 1.0, %v788
        %v790 = vmul.f32 %v787, %v789
        %v791 = vadd.f32 %v787, %v790
        %vm792 = vweird.f32 %v783
        %vm793 = vweird.f32 %v787
        %vm794 = vmor %vm792, %vm793
        %v795 = vsel %vm794, %v787, %v791
        %v796 = vand.u32 2147483647, %v783
        %vm797 = vcmp.eq.f32.partialorder %v796, 8.507059e+37
        %v798 = vand.u32 %v783, 2147483648
        %v799 = vor.u32 1.1754944e-38, %v798
        %v800 = vsel %vm797, %v799, %v795
        %v801 = vrcp.pop %v786
        %v802 = vmul.f32 %v786, %v801
        %v803 = vsub.f32 1.0, %v802
        %v804 = vmul.f32 %v801, %v803
        %v805 = vadd.f32 %v801, %v804
        %vm806 = vweird.f32 %v786
        %vm807 = vweird.f32 %v801
        %vm808 = vmor %vm806, %vm807
        %v809 = vsel %vm808, %v801, %v805
        %v810 = vand.u32 2147483647, %v786
        %vm811 = vcmp.eq.f32.partialorder %v810, 8.507059e+37
        %v812 = vand.u32 %v786, 2147483648
        %v813 = vor.u32 1.1754944e-38, %v812
        %v814 = vsel %vm811, %v813, %v809
        %v815 = vmul.f32 %v778, %v800
        %v816 = vmul.f32 %v780, %v814
        %817 = vrot.lane.b32.xlu0 %v353, 104
        %v818 = vpop.permute.xlu0 %817
        %819 = vrot.lane.b32.xlu0 %v356, 104
        %v820 = vpop.permute.xlu0 %819
        %v824 = vsel %vm366, %v815, 0
        %v827 = vsel %vm366, %v816, 0
        %829 = vmatpush.msra.mxu0 0.0
        %830 = vmatpush.msra.mxu0 0.0
        %831 = vmatpush.msra.mxu0 0.0
        %832 = vmatpush.msra.mxu0 0.0
        %833 = vmatpush.msra.mxu0 0.0
        %834 = vmatpush.msra.mxu0 0.0
        %835 = vmatpush.msra.mxu0 0.0
        %836 = vmatpush.msra.mxu0 0.0
        %837 = vmatpush.msra.mxu0 0.0
        %838 = vmatpush.msra.mxu0 0.0
        %839 = vmatpush.msra.mxu0 0.0
        %840 = vmatpush.msra.mxu0 0.0
        %841 = vmatpush.msra.mxu0 0.0
        %842 = vmatpush.msra.mxu0 0.0
        %843 = vmatpush.msra.mxu0 %v820
        %844 = vmatpush.msra.mxu0 %v818
        %845 = vmatmul.f32.gmra.mxu0 %v824
        %v846 = vpop.f32.mrf.mxu0
        %v847 = vadd.f32 0.0, %v846
        %848 = vmatmul.f32.gmra.mxu0 %v827
        %v849 = vpop.f32.mrf.mxu0
        %v850 = vadd.f32 0.0, %v849
        %851 = vdwg.mxu0
        %854 = vrot.lane.b32.xlu0 %v597, 8
        %v855 = vpop.permute.xlu0 %854
        %856 = vrot.lane.b32.xlu0 %v600, 8
        %v857 = vpop.permute.xlu0 %856
        %862 = vrot.lane.b32.xlu0 %v722, 16
        %v863 = vpop.permute.xlu0 %862
        %864 = vrot.lane.b32.xlu0 %v725, 16
        %v865 = vpop.permute.xlu0 %864
        %870 = vrot.lane.b32.xlu0 %v847, 24
        %v871 = vpop.permute.xlu0 %870
        %872 = vrot.lane.b32.xlu0 %v850, 24
        %v873 = vpop.permute.xlu0 %872
        %vm876 = vcmask 64512
        %v877 = vsel %vm876, %v470, %v855
        %v878 = vsel %vm876, %v473, %v857
        %v879 = vsel %vm366, %v877, %v863
        %v880 = vsel %vm366, %v878, %v865
        %vm881 = vcmask 195584
        %v882 = vsel %vm881, %v879, %v871
        %v883 = vsel %vm881, %v880, %v873
        %v884 = vld [vmem:[#allocation7] sm:$0xff]
        %v885 = vld [vmem:[#allocation7 + $0x8] sm:$0xff]
        %v886 = vld [vmem:[#allocation7 + $0x10] sm:$0xff]
        %v887 = vld [vmem:[#allocation7 + $0x18] sm:$0xff]
        %v888 = vld [vmem:[%s3] sm:$0x1]
        %v890 = vperm.slane %v888, 0
        %v893 = vsel %vm305, %v882, 0
        %v896 = vsel %vm305, %v883, 0
        %898 = vmatpush.msra.mxu0 0.0
        %899 = vmatpush.msra.mxu0 0.0
        %900 = vmatpush.msra.mxu0 0.0
        %901 = vmatpush.msra.mxu0 0.0
        %902 = vmatpush.msra.mxu0 0.0
        %903 = vmatpush.msra.mxu0 0.0
        %904 = vmatpush.msra.mxu0 0.0
        %905 = vmatpush.msra.mxu0 0.0
        %906 = vmatpush.msra.mxu0 0.0
        %907 = vmatpush.msra.mxu0 0.0
        %908 = vmatpush.msra.mxu0 0.0
        %909 = vmatpush.msra.mxu0 0.0
        %910 = vmatpush.msra.mxu0 %v887
        %911 = vmatpush.msra.mxu0 %v886
        %912 = vmatpush.msra.mxu0 %v885
        %913 = vmatpush.msra.mxu0 %v884
        %914 = vmatmul.f32.gmra.mxu0 %v893
        %v915 = vpop.f32.mrf.mxu0
        %v916 = vadd.f32 %v890, %v915
        %917 = vmatmul.f32.gmra.mxu0 %v896
        %v918 = vpop.f32.mrf.mxu0
        %v919 = vadd.f32 %v890, %v918
        %920 = vdwg.mxu0
        %921 = vst.msk [vmem:[%s294] sm:$0xff] %vm305, %v916
        %922 = vst.msk [vmem:[%s294 + $0x8] sm:$0xff] %vm305, %v919
        %s923 = sand.u32 %s142, 1
        %s924 = scalar_lea.sflag [#allocation4], %s923
        %s925 = sand.u32 %s142, 1
        %s926 = smul.addr %s925, 16
        %s927 = scalar_lea.vmem [#allocation10], %s926
        // Predicated region
        $region57: #{tpu_custom_call.1} parent=39 // pred_check
          %p928 = pneg %p152
        $region58: #{tpu_custom_call.1} parent=39 // pred_check_branch
          %930 = sbr.rel (%p928) target = $region60
        $region59: #{tpu_custom_call.1} parent=39 // pred_region
          %932 = vsyncadd %s924, 0
          %s933 = smul.addr %s24, 2
          %s934 = smul.addr %s933, 8
          %s935 = scalar_lea.hbm %s5, %s934
          %s936 = sshll.u32 %s927, 4
          %s937 = int_to_ptr.vmem [resolvable:$true] %s936
          %s938 = sshll.u32 %s935, 4
          %s939 = int_to_ptr.hbm [resolvable:$true] %s938
          %944 = dma.vmem_to_hbm [thread:$0]  %s937, 256, %s939, %s924, 128, 128, 8
        $region60: #{tpu_custom_call.1} parent=39 // pred_fallthru
          _
      $region40: #{tpu_custom_call.1} parent=5 // pred_fallthru
        _
      %p945 = scmp.le.s32.totalorder 2, %s19
      // Predicated region
      $region61: #{tpu_custom_call.1} parent=5 // pred_check
        %p946 = pneg %p945
      $region62: #{tpu_custom_call.1} parent=5 // pred_check_branch
        %948 = sbr.rel (%p946) target = $region64
      $region63: #{tpu_custom_call.1} parent=5 // pred_region
        %s949 = ssub.s32 %s19, 2
        // Predicated region
        $region65: #{tpu_custom_call.1} parent=63 // pred_check
          %p950 = pneg %p158
        $region66: #{tpu_custom_call.1} parent=63 // pred_check_branch
          %952 = sbr.rel (%p950) target = $region68
        $region67: #{tpu_custom_call.1} parent=63 // pred_region
          %s953 = sand.u32 %s143, 1
          %s954 = scalar_lea.sflag [#allocation4], %s953
          %s955 = sand.u32 %s143, 1
          %s956 = smul.addr %s955, 16
          %s957 = scalar_lea.vmem [#allocation10], %s956
          %959 = dma.done %s954, 256
        $region68: #{tpu_custom_call.1} parent=63 // pred_fallthru
          _
      $region64: #{tpu_custom_call.1} parent=5 // pred_fallthru
        _
    $region6: #{tpu_custom_call.1} parent=1 // loop_footer
      %s23 = sadd.s32 1, %s19
    $region7: #{tpu_custom_call.1} parent=1 // loop_footer_branch
      %18 = sbr.rel target = $region3
    $region8: #{tpu_custom_call.1} parent=1 // loop_exit
      _
    %960 = vsyncpa [#allocation3], 1
    %s961 = scalar_lea.sflag [#allocation3], 1
    %962 = vsyncpa %s961, 1
    %963 = vsyncpa [#allocation6], 1
    %964 = vsyncpa [#allocation9], 1
    %965 = vsyncpa [#allocation4], 1
    %s966 = scalar_lea.sflag [#allocation4], 1
    %967 = vsyncpa %s966, 1

</llo_original>
